<compile_context>
chip_gen: v5e
topology: v5e:2x2
jax: 0.10.0
libtpu: 0.0.40
codegen_flags: <defaults>
</compile_context>

<pallas_src>
import functools

import jax
import jax.numpy as jnp
from jax.experimental import pallas as pl
from jax.experimental.pallas import tpu as pltpu

BN_EPS = 1e-5
DEFAULT_TILE_B = 1024  # multiple of 8; safe on v5e/v6e/v7x VMEM budgets


def _round_up(n, m):
    return ((n + m - 1) // m) * m


def _mlp_kernel(
    x_ref,
    w1_ref, c1_ref,   # fc1 with bn1 folded in (bf16 W, f32 fused bias)
    w2_ref, c2_ref,   # fc2 with bn2 folded in
    w3_ref, b3_ref,
    w4_ref, b4_ref,
    w5_ref, b5_ref,
    w6_ref, b6_ref,
    o_ref,
):
    # fc1 (+ folded bn1) -> relu   (dropout = identity in eval mode)
    h = jnp.dot(x_ref[...], w1_ref[...], preferred_element_type=jnp.float32)
    h = jnp.maximum(h + c1_ref[...], 0.0)

    # fc2 (+ folded bn2) -> relu
    h = jnp.dot(h.astype(jnp.bfloat16), w2_ref[...],
                preferred_element_type=jnp.float32)
    h = jnp.maximum(h + c2_ref[...], 0.0)

    # fc3 -> relu
    h = jnp.dot(h.astype(jnp.bfloat16), w3_ref[...],
                preferred_element_type=jnp.float32)
    h = jnp.maximum(h + b3_ref[...], 0.0)

    # fc4 -> relu
    h = jnp.dot(h.astype(jnp.bfloat16), w4_ref[...],
                preferred_element_type=jnp.float32)
    h = jnp.maximum(h + b4_ref[...], 0.0)

    # fc5 -> relu
    h = jnp.dot(h.astype(jnp.bfloat16), w5_ref[...],
                preferred_element_type=jnp.float32)
    h = jnp.maximum(h + b5_ref[...], 0.0)

    # fc6 (no activation)
    h = jnp.dot(h.astype(jnp.bfloat16), w6_ref[...],
                preferred_element_type=jnp.float32)
    h = h + b6_ref[...]

    o_ref[...] = h.astype(o_ref.dtype)


@functools.partial(jax.jit, static_argnames=("tile_b",))
def lead_scoring_forward(x, kernel_params, tile_b=DEFAULT_TILE_B):
    """x: (B, input_size) float32 -> (B, 1) float32."""
    B, F = x.shape
    # Shrink the tile for tiny batches; keep it a multiple of 8 (sublane).
    tile_b = min(tile_b, _round_up(B, 8))
    padded_b = _round_up(B, tile_b)

    xb = x.astype(jnp.bfloat16)
    if padded_b != B:
        xb = jnp.pad(xb, ((0, padded_b - B), (0, 0)))

    grid = (padded_b // tile_b,)

    x_spec = pl.BlockSpec((tile_b, F), lambda i: (i, 0))
    # Constant index_map -> each weight/bias block is DMA'd once and stays
    # resident across all batch tiles.
    param_specs = [pl.BlockSpec(p.shape, lambda i: (0, 0)) for p in kernel_params]
    out_spec = pl.BlockSpec((tile_b, 1), lambda i: (i, 0))

    out = pl.pallas_call(
        _mlp_kernel,
        out_shape=jax.ShapeDtypeStruct((padded_b, 1), jnp.float32),
        grid=grid,
        in_specs=[x_spec] + param_specs,
        out_specs=out_spec,
        compiler_params=pltpu.CompilerParams(
            dimension_semantics=("parallel",),        # megacore on v7x
            vmem_limit_bytes=32 * 1024 * 1024,        # safe on v5e/v6e/v7x
        ),
    )(xb, *kernel_params)
    return out[:B]


def init_params(input_size, key):
    """Build folded kernel params.

    Returns a tuple:
      (w1, c1, w2, c2, w3, b3, w4, b4, w5, b5, w6, b6)
    with weights as (in, out) bfloat16 and biases as (1, out) float32.
    BatchNorm (eval mode) is folded into fc1/fc2:  W' = W * scale,
    c = b * scale + (beta - running_mean * scale).
    """
    dims = [(input_size, 128), (128, 64), (64, 32), (32, 16), (16, 8), (8, 1)]
    keys = jax.random.split(key, 4 * len(dims))
    params = []
    for i, (din, dout) in enumerate(dims):
        kw, kb, kg, km = keys[4 * i:4 * i + 4]
        bound = 1.0 / jnp.sqrt(din)
        w = jax.random.uniform(kw, (din, dout), jnp.float32, -bound, bound)
        b = jax.random.uniform(kb, (dout,), jnp.float32, -bound, bound)
        if i < 2:
            # Non-trivial BN params to exercise the fold (eval-mode semantics).
            gamma = jax.random.uniform(kg, (dout,), jnp.float32, 0.5, 1.5)
            beta = 0.1 * jax.random.normal(kg, (dout,))
            running_mean = 0.1 * jax.random.normal(km, (dout,))
            running_var = jax.random.uniform(km, (dout,), jnp.float32, 0.5, 1.5)
            scale = gamma / jnp.sqrt(running_var + BN_EPS)
            w = w * scale[None, :]
            b = b * scale + (beta - running_mean * scale)
        params.append(w.astype(jnp.bfloat16))
        params.append(b.reshape(1, dout).astype(jnp.float32))
    return tuple(params)


def reference_forward(x, kernel_params):
    """Pure-JAX reference using the same bf16-in / f32-accumulate recipe."""
    (w1, c1, w2, c2, w3, b3, w4, b4, w5, b5, w6, b6) = kernel_params

    def lin(h, w, b):
        return jnp.dot(h.astype(jnp.bfloat16), w,
                       preferred_element_type=jnp.float32) + b

    h = jnp.maximum(lin(x, w1, c1), 0.0)
    h = jnp.maximum(lin(h, w2, c2), 0.0)
    h = jnp.maximum(lin(h, w3, b3), 0.0)
    h = jnp.maximum(lin(h, w4, b4), 0.0)
    h = jnp.maximum(lin(h, w5, b5), 0.0)
    return lin(h, w6, b6)


if __name__ == "__main__":
    input_size = 32
    batch = 6  # non-multiple of 8 to exercise the padding / slice-back path

    x = jax.random.normal(jax.random.PRNGKey(0), (batch, input_size), jnp.float32)
    params = init_params(input_size, jax.random.PRNGKey(42))

    out = lead_scoring_forward(x, params)
    out = jax.block_until_ready(out)

    ref = reference_forward(x, params)
    assert out.shape == (batch, 1), out.shape
    assert jnp.allclose(out, ref, atol=5e-3, rtol=5e-3), "mismatch vs reference"

    print("KERNEL_OK")
</pallas_src>

<mosaic_0001>
module attributes {stable_mosaic.version = 11 : i64} {
  func.func @_mlp_kernel(%arg0: i32, %arg1: memref<8x32xbf16, #tpu.memory_space<vmem>>, %arg2: memref<32x128xbf16, #tpu.memory_space<vmem>>, %arg3: memref<1x128xf32, #tpu.memory_space<vmem>>, %arg4: memref<128x64xbf16, #tpu.memory_space<vmem>>, %arg5: memref<1x64xf32, #tpu.memory_space<vmem>>, %arg6: memref<64x32xbf16, #tpu.memory_space<vmem>>, %arg7: memref<1x32xf32, #tpu.memory_space<vmem>>, %arg8: memref<32x16xbf16, #tpu.memory_space<vmem>>, %arg9: memref<1x16xf32, #tpu.memory_space<vmem>>, %arg10: memref<16x8xbf16, #tpu.memory_space<vmem>>, %arg11: memref<1x8xf32, #tpu.memory_space<vmem>>, %arg12: memref<8x1xbf16, #tpu.memory_space<vmem>>, %arg13: memref<1x1xf32, #tpu.memory_space<vmem>>, %arg14: memref<8x1xf32, #tpu.memory_space<vmem>>) attributes {dimension_semantics = [#tpu.dimension_semantics<parallel>], iteration_bounds = array<i64: 1>, scalar_prefetch = 0 : i64, scratch_operands = 0 : i64, tpu.core_type = #tpu.core_type<tc>, window_params = [{transform_indices = @transform_0, window_bounds = array<i64: 8, 32>}, {pipeline_mode = #tpu.pipeline_mode<synchronous>, transform_indices = @transform_1, window_bounds = array<i64: 32, 128>}, {pipeline_mode = #tpu.pipeline_mode<synchronous>, transform_indices = @transform_2, window_bounds = array<i64: 1, 128>}, {pipeline_mode = #tpu.pipeline_mode<synchronous>, transform_indices = @transform_3, window_bounds = array<i64: 128, 64>}, {pipeline_mode = #tpu.pipeline_mode<synchronous>, transform_indices = @transform_4, window_bounds = array<i64: 1, 64>}, {pipeline_mode = #tpu.pipeline_mode<synchronous>, transform_indices = @transform_5, window_bounds = array<i64: 64, 32>}, {pipeline_mode = #tpu.pipeline_mode<synchronous>, transform_indices = @transform_6, window_bounds = array<i64: 1, 32>}, {pipeline_mode = #tpu.pipeline_mode<synchronous>, transform_indices = @transform_7, window_bounds = array<i64: 32, 16>}, {pipeline_mode = #tpu.pipeline_mode<synchronous>, transform_indices = @transform_8, window_bounds = array<i64: 1, 16>}, {pipeline_mode = #tpu.pipeline_mode<synchronous>, transform_indices = @transform_9, window_bounds = array<i64: 16, 8>}, {pipeline_mode = #tpu.pipeline_mode<synchronous>, transform_indices = @transform_10, window_bounds = array<i64: 1, 8>}, {pipeline_mode = #tpu.pipeline_mode<synchronous>, transform_indices = @transform_11, window_bounds = array<i64: 8, 1>}, {pipeline_mode = #tpu.pipeline_mode<synchronous>, transform_indices = @transform_12, window_bounds = array<i64: 1, 1>}, {transform_indices = @transform_13, window_bounds = array<i64: 8, 1>}]} {
    %c0 = arith.constant 0 : index
    %c0_0 = arith.constant 0 : index
    %0 = vector.load %arg1[%c0, %c0_0] : memref<8x32xbf16, #tpu.memory_space<vmem>>, vector<8x32xbf16>
    %c0_1 = arith.constant 0 : index
    %c0_2 = arith.constant 0 : index
    %1 = vector.load %arg2[%c0_1, %c0_2] : memref<32x128xbf16, #tpu.memory_space<vmem>>, vector<32x128xbf16>
    %cst = arith.constant dense<0.000000e+00> : vector<8x128xf32>
    %2 = tpu.matmul %0, %1, %cst {dimension_numbers = #tpu.dot_dimension_numbers<[1], [0], [0], [1], [0, 0, 1, 1], [], []>} : vector<8x32xbf16>, vector<32x128xbf16>, vector<8x128xf32> -> vector<8x128xf32>
    %c0_3 = arith.constant 0 : index
    %c0_4 = arith.constant 0 : index
    %3 = vector.load %arg3[%c0_3, %c0_4] : memref<1x128xf32, #tpu.memory_space<vmem>>, vector<1x128xf32>
    %4 = vector.broadcast %3 : vector<1x128xf32> to vector<8x128xf32>
    %5 = arith.addf %2, %4 : vector<8x128xf32>
    %cst_5 = arith.constant 0.000000e+00 : f32
    %6 = vector.broadcast %cst_5 : f32 to vector<8x128xf32>
    %7 = arith.maximumf %5, %6 : vector<8x128xf32>
    %8 = arith.truncf %7 : vector<8x128xf32> to vector<8x128xbf16>
    %c0_6 = arith.constant 0 : index
    %c0_7 = arith.constant 0 : index
    %9 = vector.load %arg4[%c0_6, %c0_7] : memref<128x64xbf16, #tpu.memory_space<vmem>>, vector<128x64xbf16>
    %cst_8 = arith.constant dense<0.000000e+00> : vector<8x64xf32>
    %10 = tpu.matmul %8, %9, %cst_8 {dimension_numbers = #tpu.dot_dimension_numbers<[1], [0], [0], [1], [0, 0, 1, 1], [], []>} : vector<8x128xbf16>, vector<128x64xbf16>, vector<8x64xf32> -> vector<8x64xf32>
    %c0_9 = arith.constant 0 : index
    %c0_10 = arith.constant 0 : index
    %11 = vector.load %arg5[%c0_9, %c0_10] : memref<1x64xf32, #tpu.memory_space<vmem>>, vector<1x64xf32>
    %12 = vector.broadcast %11 : vector<1x64xf32> to vector<8x64xf32>
    %13 = arith.addf %10, %12 : vector<8x64xf32>
    %cst_11 = arith.constant 0.000000e+00 : f32
    %14 = vector.broadcast %cst_11 : f32 to vector<8x64xf32>
    %15 = arith.maximumf %13, %14 : vector<8x64xf32>
    %16 = arith.truncf %15 : vector<8x64xf32> to vector<8x64xbf16>
    %c0_12 = arith.constant 0 : index
    %c0_13 = arith.constant 0 : index
    %17 = vector.load %arg6[%c0_12, %c0_13] : memref<64x32xbf16, #tpu.memory_space<vmem>>, vector<64x32xbf16>
    %cst_14 = arith.constant dense<0.000000e+00> : vector<8x32xf32>
    %18 = tpu.matmul %16, %17, %cst_14 {dimension_numbers = #tpu.dot_dimension_numbers<[1], [0], [0], [1], [0, 0, 1, 1], [], []>} : vector<8x64xbf16>, vector<64x32xbf16>, vector<8x32xf32> -> vector<8x32xf32>
    %c0_15 = arith.constant 0 : index
    %c0_16 = arith.constant 0 : index
    %19 = vector.load %arg7[%c0_15, %c0_16] : memref<1x32xf32, #tpu.memory_space<vmem>>, vector<1x32xf32>
    %20 = vector.broadcast %19 : vector<1x32xf32> to vector<8x32xf32>
    %21 = arith.addf %18, %20 : vector<8x32xf32>
    %cst_17 = arith.constant 0.000000e+00 : f32
    %22 = vector.broadcast %cst_17 : f32 to vector<8x32xf32>
    %23 = arith.maximumf %21, %22 : vector<8x32xf32>
    %24 = arith.truncf %23 : vector<8x32xf32> to vector<8x32xbf16>
    %c0_18 = arith.constant 0 : index
    %c0_19 = arith.constant 0 : index
    %25 = vector.load %arg8[%c0_18, %c0_19] : memref<32x16xbf16, #tpu.memory_space<vmem>>, vector<32x16xbf16>
    %cst_20 = arith.constant dense<0.000000e+00> : vector<8x16xf32>
    %26 = tpu.matmul %24, %25, %cst_20 {dimension_numbers = #tpu.dot_dimension_numbers<[1], [0], [0], [1], [0, 0, 1, 1], [], []>} : vector<8x32xbf16>, vector<32x16xbf16>, vector<8x16xf32> -> vector<8x16xf32>
    %c0_21 = arith.constant 0 : index
    %c0_22 = arith.constant 0 : index
    %27 = vector.load %arg9[%c0_21, %c0_22] : memref<1x16xf32, #tpu.memory_space<vmem>>, vector<1x16xf32>
    %28 = vector.broadcast %27 : vector<1x16xf32> to vector<8x16xf32>
    %29 = arith.addf %26, %28 : vector<8x16xf32>
    %cst_23 = arith.constant 0.000000e+00 : f32
    %30 = vector.broadcast %cst_23 : f32 to vector<8x16xf32>
    %31 = arith.maximumf %29, %30 : vector<8x16xf32>
    %32 = arith.truncf %31 : vector<8x16xf32> to vector<8x16xbf16>
    %c0_24 = arith.constant 0 : index
    %c0_25 = arith.constant 0 : index
    %33 = vector.load %arg10[%c0_24, %c0_25] : memref<16x8xbf16, #tpu.memory_space<vmem>>, vector<16x8xbf16>
    %cst_26 = arith.constant dense<0.000000e+00> : vector<8x8xf32>
    %34 = tpu.matmul %32, %33, %cst_26 {dimension_numbers = #tpu.dot_dimension_numbers<[1], [0], [0], [1], [0, 0, 1, 1], [], []>} : vector<8x16xbf16>, vector<16x8xbf16>, vector<8x8xf32> -> vector<8x8xf32>
    %c0_27 = arith.constant 0 : index
    %c0_28 = arith.constant 0 : index
    %35 = vector.load %arg11[%c0_27, %c0_28] : memref<1x8xf32, #tpu.memory_space<vmem>>, vector<1x8xf32>
    %36 = vector.broadcast %35 : vector<1x8xf32> to vector<8x8xf32>
    %37 = arith.addf %34, %36 : vector<8x8xf32>
    %cst_29 = arith.constant 0.000000e+00 : f32
    %38 = vector.broadcast %cst_29 : f32 to vector<8x8xf32>
    %39 = arith.maximumf %37, %38 : vector<8x8xf32>
    %40 = arith.truncf %39 : vector<8x8xf32> to vector<8x8xbf16>
    %c0_30 = arith.constant 0 : index
    %c0_31 = arith.constant 0 : index
    %41 = vector.load %arg12[%c0_30, %c0_31] : memref<8x1xbf16, #tpu.memory_space<vmem>>, vector<8x1xbf16>
    %cst_32 = arith.constant dense<0.000000e+00> : vector<8x1xf32>
    %42 = tpu.matmul %40, %41, %cst_32 {dimension_numbers = #tpu.dot_dimension_numbers<[1], [0], [0], [1], [0, 0, 1, 1], [], []>} : vector<8x8xbf16>, vector<8x1xbf16>, vector<8x1xf32> -> vector<8x1xf32>
    %c0_33 = arith.constant 0 : index
    %c0_34 = arith.constant 0 : index
    %43 = vector.load %arg13[%c0_33, %c0_34] : memref<1x1xf32, #tpu.memory_space<vmem>>, vector<1x1xf32>
    %44 = vector.broadcast %43 : vector<1x1xf32> to vector<8x1xf32>
    %45 = arith.addf %42, %44 : vector<8x1xf32>
    %c0_35 = arith.constant 0 : index
    %c0_36 = arith.constant 0 : index
    %46 = vector.load %arg14[%c0_35, %c0_36] : memref<8x1xf32, #tpu.memory_space<vmem>>, vector<8x1xf32>
    tpu.vector_store %arg14[%c0_35, %c0_36], %45 {strides = array<i32>} : memref<8x1xf32, #tpu.memory_space<vmem>>, vector<8x1xf32>,
    return
  }
  func.func @transform_0(%arg0: i32) -> (i32, i32) {
    %c0_i32 = arith.constant 0 : i32
    %c0_i32_0 = arith.constant 0 : i32
    return %arg0, %c0_i32 : i32, i32
  }
  func.func @transform_1(%arg0: i32) -> (i32, i32) {
    %c0_i32 = arith.constant 0 : i32
    %c0_i32_0 = arith.constant 0 : i32
    %c0_i32_1 = arith.constant 0 : i32
    return %c0_i32, %c0_i32_0 : i32, i32
  }
  func.func @transform_2(%arg0: i32) -> (i32, i32) {
    %c0_i32 = arith.constant 0 : i32
    %c0_i32_0 = arith.constant 0 : i32
    %c0_i32_1 = arith.constant 0 : i32
    return %c0_i32, %c0_i32_0 : i32, i32
  }
  func.func @transform_3(%arg0: i32) -> (i32, i32) {
    %c0_i32 = arith.constant 0 : i32
    %c0_i32_0 = arith.constant 0 : i32
    %c0_i32_1 = arith.constant 0 : i32
    return %c0_i32, %c0_i32_0 : i32, i32
  }
  func.func @transform_4(%arg0: i32) -> (i32, i32) {
    %c0_i32 = arith.constant 0 : i32
    %c0_i32_0 = arith.constant 0 : i32
    %c0_i32_1 = arith.constant 0 : i32
    return %c0_i32, %c0_i32_0 : i32, i32
  }
  func.func @transform_5(%arg0: i32) -> (i32, i32) {
    %c0_i32 = arith.constant 0 : i32
    %c0_i32_0 = arith.constant 0 : i32
    %c0_i32_1 = arith.constant 0 : i32
    return %c0_i32, %c0_i32_0 : i32, i32
  }
  func.func @transform_6(%arg0: i32) -> (i32, i32) {
    %c0_i32 = arith.constant 0 : i32
    %c0_i32_0 = arith.constant 0 : i32
    %c0_i32_1 = arith.constant 0 : i32
    return %c0_i32, %c0_i32_0 : i32, i32
  }
  func.func @transform_7(%arg0: i32) -> (i32, i32) {
    %c0_i32 = arith.constant 0 : i32
    %c0_i32_0 = arith.constant 0 : i32
    %c0_i32_1 = arith.constant 0 : i32
    return %c0_i32, %c0_i32_0 : i32, i32
  }
  func.func @transform_8(%arg0: i32) -> (i32, i32) {
    %c0_i32 = arith.constant 0 : i32
    %c0_i32_0 = arith.constant 0 : i32
    %c0_i32_1 = arith.constant 0 : i32
    return %c0_i32, %c0_i32_0 : i32, i32
  }
  func.func @transform_9(%arg0: i32) -> (i32, i32) {
    %c0_i32 = arith.constant 0 : i32
    %c0_i32_0 = arith.constant 0 : i32
    %c0_i32_1 = arith.constant 0 : i32
    return %c0_i32, %c0_i32_0 : i32, i32
  }
  func.func @transform_10(%arg0: i32) -> (i32, i32) {
    %c0_i32 = arith.constant 0 : i32
    %c0_i32_0 = arith.constant 0 : i32
    %c0_i32_1 = arith.constant 0 : i32
    return %c0_i32, %c0_i32_0 : i32, i32
  }
  func.func @transform_11(%arg0: i32) -> (i32, i32) {
    %c0_i32 = arith.constant 0 : i32
    %c0_i32_0 = arith.constant 0 : i32
    %c0_i32_1 = arith.constant 0 : i32
    return %c0_i32, %c0_i32_0 : i32, i32
  }
  func.func @transform_12(%arg0: i32) -> (i32, i32) {
    %c0_i32 = arith.constant 0 : i32
    %c0_i32_0 = arith.constant 0 : i32
    %c0_i32_1 = arith.constant 0 : i32
    return %c0_i32, %c0_i32_0 : i32, i32
  }
  func.func @transform_13(%arg0: i32) -> (i32, i32) {
    %c0_i32 = arith.constant 0 : i32
    %c0_i32_0 = arith.constant 0 : i32
    return %arg0, %c0_i32 : i32, i32
  }
}

</mosaic_0001>

<llo_original>
// kernel: lead_scoring_forward.1
$region0: #{lead_scoring_forward.1}
  #allocation0 [shape = 'u32[]', space=smem, size = 0x4, offset = 0x4, fixed_abs, tag = 'smem constant byte address 0x4 - core index']
  #allocation1 [shape = 'u32[72,128]{1,0:T(1,128)}', space=vmem, size = 0x9000, scoped, tag = 'internal scratch']
  #allocation2 [shape = 'f32[1,1]{1,0:T(1,128)S(1)}', space=vmem, size = 0x200, scoped, tag = 'scoped memory for lead_scoring_forward.1']
  %s0 = inlined_call_operand.vmem [shape: bf16[8,32], index: 0, kind: input, shape index: {}]
  %s1 = inlined_call_operand.vmem [shape: bf16[32,128], index: 1, kind: input, shape index: {}]
  %s2 = inlined_call_operand.vmem [shape: f32[1,128], index: 2, kind: input, shape index: {}]
  %s3 = inlined_call_operand.vmem [shape: bf16[128,64], index: 3, kind: input, shape index: {}]
  %s4 = inlined_call_operand.vmem [shape: f32[1,64], index: 4, kind: input, shape index: {}]
  %s5 = inlined_call_operand.vmem [shape: bf16[64,32], index: 5, kind: input, shape index: {}]
  %s6 = inlined_call_operand.vmem [shape: f32[1,32], index: 6, kind: input, shape index: {}]
  %s7 = inlined_call_operand.vmem [shape: bf16[32,16], index: 7, kind: input, shape index: {}]
  %s8 = inlined_call_operand.vmem [shape: f32[1,16], index: 8, kind: input, shape index: {}]
  %s9 = inlined_call_operand.vmem [shape: bf16[16,8], index: 9, kind: input, shape index: {}]
  %s10 = inlined_call_operand.vmem [shape: f32[1,8], index: 10, kind: input, shape index: {}]
  %s11 = inlined_call_operand.vmem [shape: bf16[8,1], index: 11, kind: input, shape index: {}]
  %s12 = inlined_call_operand.<no memory space> [shape: f32[1,1], index: 12, kind: input, shape index: {}]
  %s13 = inlined_call_operand.vmem [shape: f32[8,1], index: 13, kind: output, shape index: {}]
  %s14 = sld [smem:[#allocation0]]
  $region62: #{lead_scoring_forward.1} parent=0
    _
  %s16 = ssub.s32 1, %s14
  %s17 = scalar_select 0, %s16, %s14
  %v18 = vstv %s12
  %19 = vst [vmem:[#allocation2] sm:$0x1] %v18
  // Predicated region
  $region2: #{lead_scoring_forward.1} parent=0 // pred_check
    _
  $region3: #{lead_scoring_forward.1} parent=0 // pred_check_branch
    %21 = sbr.rel (0) target = $region5
  $region4: #{lead_scoring_forward.1} parent=0 // pred_region
    _
  $region5: #{lead_scoring_forward.1} parent=0 // pred_fallthru
    _
  // Predicated region
  $region6: #{lead_scoring_forward.1} parent=0 // pred_check
    _
  $region7: #{lead_scoring_forward.1} parent=0 // pred_check_branch
    %23 = sbr.rel (0) target = $region9
  $region8: #{lead_scoring_forward.1} parent=0 // pred_region
    _
  $region9: #{lead_scoring_forward.1} parent=0 // pred_fallthru
    _
  // Predicated region
  $region10: #{lead_scoring_forward.1} parent=0 // pred_check
    _
  $region11: #{lead_scoring_forward.1} parent=0 // pred_check_branch
    %25 = sbr.rel (0) target = $region13
  $region12: #{lead_scoring_forward.1} parent=0 // pred_region
    _
  $region13: #{lead_scoring_forward.1} parent=0 // pred_fallthru
    _
  // Predicated region
  $region14: #{lead_scoring_forward.1} parent=0 // pred_check
    _
  $region15: #{lead_scoring_forward.1} parent=0 // pred_check_branch
    %27 = sbr.rel (0) target = $region17
  $region16: #{lead_scoring_forward.1} parent=0 // pred_region
    _
  $region17: #{lead_scoring_forward.1} parent=0 // pred_fallthru
    _
  // Predicated region
  $region18: #{lead_scoring_forward.1} parent=0 // pred_check
    _
  $region19: #{lead_scoring_forward.1} parent=0 // pred_check_branch
    %29 = sbr.rel (0) target = $region21
  $region20: #{lead_scoring_forward.1} parent=0 // pred_region
    _
  $region21: #{lead_scoring_forward.1} parent=0 // pred_fallthru
    _
  // Predicated region
  $region22: #{lead_scoring_forward.1} parent=0 // pred_check
    _
  $region23: #{lead_scoring_forward.1} parent=0 // pred_check_branch
    %31 = sbr.rel (0) target = $region25
  $region24: #{lead_scoring_forward.1} parent=0 // pred_region
    _
  $region25: #{lead_scoring_forward.1} parent=0 // pred_fallthru
    _
  // Predicated region
  $region26: #{lead_scoring_forward.1} parent=0 // pred_check
    _
  $region27: #{lead_scoring_forward.1} parent=0 // pred_check_branch
    %33 = sbr.rel (0) target = $region29
  $region28: #{lead_scoring_forward.1} parent=0 // pred_region
    _
  $region29: #{lead_scoring_forward.1} parent=0 // pred_fallthru
    _
  // Predicated region
  $region30: #{lead_scoring_forward.1} parent=0 // pred_check
    _
  $region31: #{lead_scoring_forward.1} parent=0 // pred_check_branch
    %35 = sbr.rel (0) target = $region33
  $region32: #{lead_scoring_forward.1} parent=0 // pred_region
    _
  $region33: #{lead_scoring_forward.1} parent=0 // pred_fallthru
    _
  // Predicated region
  $region34: #{lead_scoring_forward.1} parent=0 // pred_check
    _
  $region35: #{lead_scoring_forward.1} parent=0 // pred_check_branch
    %37 = sbr.rel (0) target = $region37
  $region36: #{lead_scoring_forward.1} parent=0 // pred_region
    _
  $region37: #{lead_scoring_forward.1} parent=0 // pred_fallthru
    _
  // Predicated region
  $region38: #{lead_scoring_forward.1} parent=0 // pred_check
    _
  $region39: #{lead_scoring_forward.1} parent=0 // pred_check_branch
    %39 = sbr.rel (0) target = $region41
  $region40: #{lead_scoring_forward.1} parent=0 // pred_region
    _
  $region41: #{lead_scoring_forward.1} parent=0 // pred_fallthru
    _
  // Predicated region
  $region42: #{lead_scoring_forward.1} parent=0 // pred_check
    _
  $region43: #{lead_scoring_forward.1} parent=0 // pred_check_branch
    %41 = sbr.rel (0) target = $region45
  $region44: #{lead_scoring_forward.1} parent=0 // pred_region
    _
  $region45: #{lead_scoring_forward.1} parent=0 // pred_fallthru
    _
  // Predicated region
  $region46: #{lead_scoring_forward.1} parent=0 // pred_check
    _
  $region47: #{lead_scoring_forward.1} parent=0 // pred_check_branch
    %43 = sbr.rel (0) target = $region49
  $region48: #{lead_scoring_forward.1} parent=0 // pred_region
    _
  $region49: #{lead_scoring_forward.1} parent=0 // pred_fallthru
    _
  // Predicated region
  $region50: #{lead_scoring_forward.1} parent=0 // pred_check
    _
  $region51: #{lead_scoring_forward.1} parent=0 // pred_check_branch
    %45 = sbr.rel (0) target = $region53
  $region52: #{lead_scoring_forward.1} parent=0 // pred_region
    _
  $region53: #{lead_scoring_forward.1} parent=0 // pred_fallthru
    _
  %v47 = vld [vmem:[%s0] sm:$0xf]
  %v48 = vld [vmem:[%s1] sm:$0xf]
  %v49 = vld [vmem:[%s1 + $0x4] sm:$0xf]
  %v50 = vld [vmem:[%s1 + $0x8] sm:$0xf]
  %v51 = vld [vmem:[%s1 + $0xc] sm:$0xf]
  %v52 = vld [vmem:[%s2] sm:$0x1]
  %v54 = vperm.slane %v52, 0
  %v60 = vunpack.c.l.b16 %v48
  %v61 = vunpack.c.l.b16 %v49
  %v62 = vunpack.c.l.b16 %v50
  %v63 = vunpack.c.l.b16 %v51
  %v64 = vpack.c.b16 %v61, %v60
  %v65 = vpack.c.b16 %v63, %v62
  %vm68 = vcmask 261120
  %v70 = vsel %vm68, %v47, 0
  %72 = vmatpush.bf16.msra.mxu0 0
  %73 = vmatpush.bf16.msra.mxu0 0
  %74 = vmatpush.bf16.msra.mxu0 0
  %75 = vmatpush.bf16.msra.mxu0 0
  %76 = vmatpush.bf16.msra.mxu0 0
  %77 = vmatpush.bf16.msra.mxu0 0
  %78 = vmatpush.bf16.msra.mxu0 %v65
  %79 = vmatpush.bf16.msra.mxu0 %v64
  %80 = vmatmul.bf16.gmra.mxu0 %v70
  %v81 = vpop.f32.mrf.mxu0
  %v82 = vadd.f32 %v54, %v81
  %v83 = vpop.f32.mrf.mxu0
  %84 = vdwg.mxu0
  %v85 = vmax.f32 %v82, 0.0
  %v86 = vpack.c.bf16 %v85, %v85
  %v87 = vld [vmem:[%s3] sm:$0xf]
  %v88 = vld [vmem:[%s3 + $0x4] sm:$0xf]
  %v89 = vld [vmem:[%s3 + $0x8] sm:$0xf]
  %v90 = vld [vmem:[%s3 + $0xc] sm:$0xf]
  %v91 = vld [vmem:[%s3 + $0x10] sm:$0xf]
  %v92 = vld [vmem:[%s3 + $0x14] sm:$0xf]
  %v93 = vld [vmem:[%s3 + $0x18] sm:$0xf]
  %v94 = vld [vmem:[%s3 + $0x1c] sm:$0xf]
  %v95 = vld [vmem:[%s3 + $0x20] sm:$0xf]
  %v96 = vld [vmem:[%s3 + $0x24] sm:$0xf]
  %v97 = vld [vmem:[%s3 + $0x28] sm:$0xf]
  %v98 = vld [vmem:[%s3 + $0x2c] sm:$0xf]
  %v99 = vld [vmem:[%s3 + $0x30] sm:$0xf]
  %v100 = vld [vmem:[%s3 + $0x34] sm:$0xf]
  %v101 = vld [vmem:[%s3 + $0x38] sm:$0xf]
  %v102 = vld [vmem:[%s3 + $0x3c] sm:$0xf]
  %v103 = vld [vmem:[%s4] sm:$0x1]
  %v105 = vperm.slane %v103, 0
  %v123 = vunpack.c.l.b16 %v87
  %v124 = vunpack.c.l.b16 %v88
  %v125 = vunpack.c.l.b16 %v89
  %v126 = vunpack.c.l.b16 %v90
  %v127 = vunpack.c.l.b16 %v91
  %v128 = vunpack.c.l.b16 %v92
  %v129 = vunpack.c.l.b16 %v93
  %v130 = vunpack.c.l.b16 %v94
  %v131 = vunpack.c.l.b16 %v95
  %v132 = vunpack.c.l.b16 %v96
  %v133 = vunpack.c.l.b16 %v97
  %v134 = vunpack.c.l.b16 %v98
  %v135 = vunpack.c.l.b16 %v99
  %v136 = vunpack.c.l.b16 %v100
  %v137 = vunpack.c.l.b16 %v101
  %v138 = vunpack.c.l.b16 %v102
  %v139 = vpack.c.b16 %v124, %v123
  %v140 = vpack.c.b16 %v126, %v125
  %v141 = vpack.c.b16 %v128, %v127
  %v142 = vpack.c.b16 %v130, %v129
  %v143 = vpack.c.b16 %v132, %v131
  %v144 = vpack.c.b16 %v134, %v133
  %v145 = vpack.c.b16 %v136, %v135
  %v146 = vpack.c.b16 %v138, %v137
  %155 = vmatpush.bf16.msra.mxu0 %v146
  %156 = vmatpush.bf16.msra.mxu0 %v145
  %157 = vmatpush.bf16.msra.mxu0 %v144
  %158 = vmatpush.bf16.msra.mxu0 %v143
  %159 = vmatpush.bf16.msra.mxu0 %v142
  %160 = vmatpush.bf16.msra.mxu0 %v141
  %161 = vmatpush.bf16.msra.mxu0 %v140
  %162 = vmatpush.bf16.msra.mxu0 %v139
  %163 = vmatmul.bf16.gmra.mxu0 %v86
  %v164 = vpop.f32.mrf.mxu0
  %v165 = vadd.f32 %v105, %v164
  %v166 = vpop.f32.mrf.mxu0
  %167 = vdwg.mxu0
  %v168 = vmax.f32 %v165, 0.0
  %v169 = vpack.c.bf16 %v168, %v168
  %v170 = vld [vmem:[%s5] sm:$0xf]
  %v171 = vld [vmem:[%s5 + $0x4] sm:$0xf]
  %v172 = vld [vmem:[%s5 + $0x8] sm:$0xf]
  %v173 = vld [vmem:[%s5 + $0xc] sm:$0xf]
  %v174 = vld [vmem:[%s5 + $0x10] sm:$0xf]
  %v175 = vld [vmem:[%s5 + $0x14] sm:$0xf]
  %v176 = vld [vmem:[%s5 + $0x18] sm:$0xf]
  %v177 = vld [vmem:[%s5 + $0x1c] sm:$0xf]
  %v178 = vld [vmem:[%s6] sm:$0x1]
  %v180 = vperm.slane %v178, 0
  %v190 = vunpack.c.l.b16 %v170
  %v191 = vunpack.c.l.b16 %v171
  %v192 = vunpack.c.l.b16 %v172
  %v193 = vunpack.c.l.b16 %v173
  %v194 = vunpack.c.l.b16 %v174
  %v195 = vunpack.c.l.b16 %v175
  %v196 = vunpack.c.l.b16 %v176
  %v197 = vunpack.c.l.b16 %v177
  %v198 = vpack.c.b16 %v191, %v190
  %v199 = vpack.c.b16 %v193, %v192
  %v200 = vpack.c.b16 %v195, %v194
  %v201 = vpack.c.b16 %v197, %v196
  %vm206 = vcmask 523264
  %v208 = vsel %vm206, %v169, 0
  %210 = vmatpush.bf16.msra.mxu0 0
  %211 = vmatpush.bf16.msra.mxu0 0
  %212 = vmatpush.bf16.msra.mxu0 0
  %213 = vmatpush.bf16.msra.mxu0 0
  %214 = vmatpush.bf16.msra.mxu0 %v201
  %215 = vmatpush.bf16.msra.mxu0 %v200
  %216 = vmatpush.bf16.msra.mxu0 %v199
  %217 = vmatpush.bf16.msra.mxu0 %v198
  %218 = vmatmul.bf16.gmra.mxu0 %v208
  %v219 = vpop.f32.mrf.mxu0
  %v220 = vadd.f32 %v180, %v219
  %v221 = vpop.f32.mrf.mxu0
  %222 = vdwg.mxu0
  %v223 = vmax.f32 %v220, 0.0
  %v224 = vpack.c.bf16 %v223, %v223
  %v225 = vld [vmem:[%s7] sm:$0xf]
  %v226 = vld [vmem:[%s7 + $0x4] sm:$0xf]
  %v227 = vld [vmem:[%s7 + $0x8] sm:$0xf]
  %v228 = vld [vmem:[%s7 + $0xc] sm:$0xf]
  %v229 = vld [vmem:[%s8] sm:$0x1]
  %v231 = vperm.slane %v229, 0
  %v237 = vunpack.c.l.b16 %v225
  %v238 = vunpack.c.l.b16 %v226
  %v239 = vunpack.c.l.b16 %v227
  %v240 = vunpack.c.l.b16 %v228
  %v241 = vpack.c.b16 %v238, %v237
  %v242 = vpack.c.b16 %v240, %v239
  %v246 = vsel %vm68, %v224, 0
  %248 = vmatpush.bf16.msra.mxu0 0
  %249 = vmatpush.bf16.msra.mxu0 0
  %250 = vmatpush.bf16.msra.mxu0 0
  %251 = vmatpush.bf16.msra.mxu0 0
  %252 = vmatpush.bf16.msra.mxu0 0
  %253 = vmatpush.bf16.msra.mxu0 0
  %254 = vmatpush.bf16.msra.mxu0 %v242
  %255 = vmatpush.bf16.msra.mxu0 %v241
  %256 = vmatmul.bf16.gmra.mxu0 %v246
  %v257 = vpop.f32.mrf.mxu0
  %v258 = vadd.f32 %v231, %v257
  %v259 = vpop.f32.mrf.mxu0
  %260 = vdwg.mxu0
  %v261 = vmax.f32 %v258, 0.0
  %v262 = vpack.c.bf16 %v261, %v261
  %v263 = vld [vmem:[%s9] sm:$0xf]
  %v264 = vld [vmem:[%s9 + $0x4] sm:$0xf]
  %v265 = vld [vmem:[%s10] sm:$0x1]
  %v267 = vperm.slane %v265, 0
  %v271 = vunpack.c.l.b16 %v263
  %v272 = vunpack.c.l.b16 %v264
  %v273 = vpack.c.b16 %v272, %v271
  %vm275 = vcmask 130048
  %v277 = vsel %vm275, %v262, 0
  %279 = vmatpush.bf16.msra.mxu0 0
  %280 = vmatpush.bf16.msra.mxu0 0
  %281 = vmatpush.bf16.msra.mxu0 0
  %282 = vmatpush.bf16.msra.mxu0 0
  %283 = vmatpush.bf16.msra.mxu0 0
  %284 = vmatpush.bf16.msra.mxu0 0
  %285 = vmatpush.bf16.msra.mxu0 0
  %286 = vmatpush.bf16.msra.mxu0 %v273
  %287 = vmatmul.bf16.gmra.mxu0 %v277
  %v288 = vpop.f32.mrf.mxu0
  %v289 = vadd.f32 %v267, %v288
  %v290 = vpop.f32.mrf.mxu0
  %291 = vdwg.mxu0
  %v292 = vmax.f32 %v289, 0.0
  %v293 = vpack.c.bf16 %v292, %v292
  %v294 = vld [vmem:[%s11] sm:$0xf]
  %v295 = vld [vmem:[#allocation2] sm:$0x1]
  %v297 = vperm.slane %v295, 0
  %vm299 = vcmask 64512
  %v301 = vsel %vm299, %v293, 0
  %vm303 = vcmask 1043456
  %v305 = vsel %vm303, %v294, 0
  %307 = vmatpush.bf16.msra.mxu0 0
  %308 = vmatpush.bf16.msra.mxu0 0
  %309 = vmatpush.bf16.msra.mxu0 0
  %310 = vmatpush.bf16.msra.mxu0 0
  %311 = vmatpush.bf16.msra.mxu0 0
  %312 = vmatpush.bf16.msra.mxu0 0
  %313 = vmatpush.bf16.msra.mxu0 0
  %314 = vmatpush.bf16.msra.mxu0 %v305
  %315 = vmatmul.bf16.gmra.mxu0 %v301
  %v316 = vpop.f32.mrf.mxu0
  %v317 = vadd.f32 %v297, %v316
  %v318 = vpop.f32.mrf.mxu0
  %319 = vdwg.mxu0
  %vm320 = vcmask 7168
  %321 = vst.msk [vmem:[%s13] sm:$0xff] %vm320, %v317
  // Predicated region
  $region54: #{lead_scoring_forward.1} parent=0 // pred_check
    _
  $region55: #{lead_scoring_forward.1} parent=0 // pred_check_branch
    %323 = sbr.rel (0) target = $region57
  $region56: #{lead_scoring_forward.1} parent=0 // pred_region
    _
  $region57: #{lead_scoring_forward.1} parent=0 // pred_fallthru
    _
  // Predicated region
  $region58: #{lead_scoring_forward.1} parent=0 // pred_check
    _
  $region59: #{lead_scoring_forward.1} parent=0 // pred_check_branch
    %325 = sbr.rel (0) target = $region61
  $region60: #{lead_scoring_forward.1} parent=0 // pred_region
    _
  $region61: #{lead_scoring_forward.1} parent=0 // pred_fallthru
    _

</llo_original>
